<compile_context>
chip_gen: v7x
topology: tpu7x:2x2x1
jax: 0.10.0
libtpu: 0.0.40
codegen_flags: <defaults>
</compile_context>

<pallas_src>
import jax
import jax.numpy as jnp
from jax.experimental import pallas as pl
from jax.experimental.pallas import tpu as pltpu


def _mlp_kernel(x_ref,
                w1_ref, b1_ref,
                w2_ref, b2_ref,
                w3_ref, b3_ref,
                w4_ref, b4_ref,
                w5t_ref, b5_ref,
                o_ref):
    mm_dtype = w1_ref.dtype              # float32, or bfloat16 when use_bf16=True

    # x tile arrives in its natural (TB, K) layout (no wrapper-side transpose).
    # Contract dim 1 of W (out, in) with dim 1 of x (TB, in) so the batch ends
    # up in lanes: result is (out, TB).  Mosaic does the operand swap on the
    # XLU, which is otherwise idle in this kernel.
    x = x_ref[...].astype(mm_dtype)                                    # (TB, K)
    h = jax.lax.dot_general(w1_ref[...], x, (((1,), (1,)), ((), ())),
                            preferred_element_type=jnp.float32)
    h = jnp.maximum(h + b1_ref[...], 0.0)                              # (64, TB)

    h = jnp.dot(w2_ref[...], h.astype(mm_dtype),
                preferred_element_type=jnp.float32)
    h = jnp.maximum(h + b2_ref[...], 0.0)                              # (64, TB)

    h = jnp.dot(w3_ref[...], h.astype(mm_dtype),
                preferred_element_type=jnp.float32)
    h = jnp.maximum(h + b3_ref[...], 0.0)                              # (32, TB)

    h = jnp.dot(w4_ref[...], h.astype(mm_dtype),
                preferred_element_type=jnp.float32)
    h = jnp.maximum(h + b4_ref[...], 0.0)                              # (16, TB)

    # Final 16 -> 1 layer: VPU multiply + sublane (XLU) reduce instead of an
    # M=1 MXU pass.  Keep this elementwise path in f32 (v5e VPU has no bf16).
    w5 = w5t_ref[...].astype(jnp.float32)                              # (16, 1)
    out = jnp.sum(h * w5, axis=0, keepdims=True) + b5_ref[...]         # (1, TB)
    o_ref[...] = out.astype(o_ref.dtype)


def net_forward(x, params, *, tb=8192, use_bf16=False):
    """x: (B, 45) float32.  params: list of (W:(out,in), b:(out,)) PyTorch layout."""
    B, K = x.shape

    # Tile selection: as large as reasonable (amortize per-step overhead,
    # long DMA bursts) but capped at ~half the 128-aligned batch so the grid
    # keeps >= 2 steps for v7x megacore sharding.  Always a multiple of 128.
    half = ((pl.cdiv(B, 2) + 127) // 128) * 128
    TB = max(128, min(tb, half))
    n_tiles = pl.cdiv(B, TB)
    B_pad = n_tiles * TB
    if B_pad != B:
        # Tail-only concession: pad the batch so blocks divide exactly (skipped
        # entirely when B tiles evenly).  Padded rows only ever feed padded
        # output columns, which are sliced off below.
        x = jnp.pad(x, ((0, B_pad - B), (0, 0)))

    (w1, b1), (w2, b2), (w3, b3), (w4, b4), (w5, b5) = params
    mm_dtype = jnp.bfloat16 if use_bf16 else jnp.float32
    flat = [
        w1.astype(mm_dtype), b1.reshape(-1, 1),
        w2.astype(mm_dtype), b2.reshape(-1, 1),
        w3.astype(mm_dtype), b3.reshape(-1, 1),
        w4.astype(mm_dtype), b4.reshape(-1, 1),
        w5.reshape(-1, 1),   b5.reshape(1, 1),      # (16,1), (1,1) stay f32 (VPU path)
    ]

    resident = lambda a: pl.BlockSpec(a.shape, lambda i: (0, 0))
    in_specs = [pl.BlockSpec((TB, K), lambda i: (i, 0))] + [resident(a) for a in flat]

    flops_per_row = 2 * (K * 64 + 64 * 64 + 64 * 32 + 32 * 16 + 16 * 1)
    param_bytes = sum(int(a.size) * a.dtype.itemsize for a in flat)
    cost = pl.CostEstimate(
        flops=flops_per_row * B_pad,
        transcendentals=0,
        bytes_accessed=B_pad * (K * 4 + 4) + param_bytes,
    )

    out = pl.pallas_call(
        _mlp_kernel,
        out_shape=jax.ShapeDtypeStruct((1, B_pad), jnp.float32),
        grid=(n_tiles,),
        in_specs=in_specs,
        out_specs=pl.BlockSpec((1, TB), lambda i: (0, i)),
        compiler_params=pltpu.CompilerParams(
            dimension_semantics=("parallel",),
            vmem_limit_bytes=40 * 1024 * 1024,
        ),
        cost_estimate=cost,
    )(x, *flat)

    return out[0, :B].reshape(B, 1)


def init_params(key, dims):
    """PyTorch nn.Linear default init: U(-1/sqrt(fan_in), ...), W stored (out, in)."""
    params = []
    for i in range(len(dims) - 1):
        fan_in, fan_out = dims[i], dims[i + 1]
        key, kw, kb = jax.random.split(key, 3)
        bound = 1.0 / jnp.sqrt(jnp.float32(fan_in))
        w = jax.random.uniform(kw, (fan_out, fan_in), jnp.float32, -bound, bound)
        b = jax.random.uniform(kb, (fan_out,), jnp.float32, -bound, bound)
        params.append((w, b))
    return params


def reference_forward(x, params):
    h = x
    n = len(params)
    for i, (w, b) in enumerate(params):
        h = h @ w.T + b
        if i < n - 1:
            h = jnp.maximum(h, 0.0)
    return h


if __name__ == "__main__":
    N = 10
    n_inputs = int(N * N / 2 - N / 2)        # 45
    dims = [n_inputs, 64, 64, 32, 16, 1]
    batch = 8

    key = jax.random.PRNGKey(0)
    kx, kp = jax.random.split(key)
    x = jax.random.normal(kx, (batch, n_inputs), jnp.float32)
    params = init_params(kp, dims)

    out = net_forward(x, params)             # f32 path (use_bf16=False) for parity
    out = jax.block_until_ready(out)

    ref = reference_forward(x, params)
    assert out.shape == (batch, 1)
    assert jnp.allclose(out, ref, atol=1e-4, rtol=1e-4)

    print("KERNEL_OK")
</pallas_src>

<mosaic_0001>
module attributes {stable_mosaic.version = 11 : i64} {
  func.func @_mlp_kernel(%arg0: i32, %arg1: memref<128x45xf32, #tpu.memory_space<vmem>>, %arg2: memref<64x45xf32, #tpu.memory_space<vmem>>, %arg3: memref<64x1xf32, #tpu.memory_space<vmem>>, %arg4: memref<64x64xf32, #tpu.memory_space<vmem>>, %arg5: memref<64x1xf32, #tpu.memory_space<vmem>>, %arg6: memref<32x64xf32, #tpu.memory_space<vmem>>, %arg7: memref<32x1xf32, #tpu.memory_space<vmem>>, %arg8: memref<16x32xf32, #tpu.memory_space<vmem>>, %arg9: memref<16x1xf32, #tpu.memory_space<vmem>>, %arg10: memref<16x1xf32, #tpu.memory_space<vmem>>, %arg11: memref<1x1xf32, #tpu.memory_space<vmem>>, %arg12: memref<1x128xf32, #tpu.memory_space<vmem>>) attributes {dimension_semantics = [#tpu.dimension_semantics<parallel>], iteration_bounds = array<i64: 1>, scalar_prefetch = 0 : i64, scratch_operands = 0 : i64, tpu.core_type = #tpu.core_type<tc>, window_params = [{transform_indices = @transform_0, window_bounds = array<i64: 128, 45>}, {pipeline_mode = #tpu.pipeline_mode<synchronous>, transform_indices = @transform_1, window_bounds = array<i64: 64, 45>}, {pipeline_mode = #tpu.pipeline_mode<synchronous>, transform_indices = @transform_2, window_bounds = array<i64: 64, 1>}, {pipeline_mode = #tpu.pipeline_mode<synchronous>, transform_indices = @transform_3, window_bounds = array<i64: 64, 64>}, {pipeline_mode = #tpu.pipeline_mode<synchronous>, transform_indices = @transform_4, window_bounds = array<i64: 64, 1>}, {pipeline_mode = #tpu.pipeline_mode<synchronous>, transform_indices = @transform_5, window_bounds = array<i64: 32, 64>}, {pipeline_mode = #tpu.pipeline_mode<synchronous>, transform_indices = @transform_6, window_bounds = array<i64: 32, 1>}, {pipeline_mode = #tpu.pipeline_mode<synchronous>, transform_indices = @transform_7, window_bounds = array<i64: 16, 32>}, {pipeline_mode = #tpu.pipeline_mode<synchronous>, transform_indices = @transform_8, window_bounds = array<i64: 16, 1>}, {pipeline_mode = #tpu.pipeline_mode<synchronous>, transform_indices = @transform_9, window_bounds = array<i64: 16, 1>}, {pipeline_mode = #tpu.pipeline_mode<synchronous>, transform_indices = @transform_10, window_bounds = array<i64: 1, 1>}, {transform_indices = @transform_11, window_bounds = array<i64: 1, 128>}]} {
    %c0 = arith.constant 0 : index
    %c0_0 = arith.constant 0 : index
    %0 = vector.load %arg1[%c0, %c0_0] : memref<128x45xf32, #tpu.memory_space<vmem>>, vector<128x45xf32>
    %c0_1 = arith.constant 0 : index
    %c0_2 = arith.constant 0 : index
    %1 = vector.load %arg2[%c0_1, %c0_2] : memref<64x45xf32, #tpu.memory_space<vmem>>, vector<64x45xf32>
    %cst = arith.constant dense<0.000000e+00> : vector<64x128xf32>
    %2 = tpu.matmul %1, %0, %cst {dimension_numbers = #tpu.dot_dimension_numbers<[1], [1], [0], [0], [0, 0, 1, 0], [], []>} : vector<64x45xf32>, vector<128x45xf32>, vector<64x128xf32> -> vector<64x128xf32>
    %c0_3 = arith.constant 0 : index
    %c0_4 = arith.constant 0 : index
    %3 = vector.load %arg3[%c0_3, %c0_4] : memref<64x1xf32, #tpu.memory_space<vmem>>, vector<64x1xf32>
    %4 = vector.broadcast %3 : vector<64x1xf32> to vector<64x128xf32>
    %5 = arith.addf %2, %4 : vector<64x128xf32>
    %cst_5 = arith.constant 0.000000e+00 : f32
    %6 = vector.broadcast %cst_5 : f32 to vector<64x128xf32>
    %7 = arith.maximumf %5, %6 : vector<64x128xf32>
    %c0_6 = arith.constant 0 : index
    %c0_7 = arith.constant 0 : index
    %8 = vector.load %arg4[%c0_6, %c0_7] : memref<64x64xf32, #tpu.memory_space<vmem>>, vector<64x64xf32>
    %cst_8 = arith.constant dense<0.000000e+00> : vector<64x128xf32>
    %9 = tpu.matmul %8, %7, %cst_8 {dimension_numbers = #tpu.dot_dimension_numbers<[1], [0], [0], [1], [0, 0, 1, 1], [], []>} : vector<64x64xf32>, vector<64x128xf32>, vector<64x128xf32> -> vector<64x128xf32>
    %c0_9 = arith.constant 0 : index
    %c0_10 = arith.constant 0 : index
    %10 = vector.load %arg5[%c0_9, %c0_10] : memref<64x1xf32, #tpu.memory_space<vmem>>, vector<64x1xf32>
    %11 = vector.broadcast %10 : vector<64x1xf32> to vector<64x128xf32>
    %12 = arith.addf %9, %11 : vector<64x128xf32>
    %cst_11 = arith.constant 0.000000e+00 : f32
    %13 = vector.broadcast %cst_11 : f32 to vector<64x128xf32>
    %14 = arith.maximumf %12, %13 : vector<64x128xf32>
    %c0_12 = arith.constant 0 : index
    %c0_13 = arith.constant 0 : index
    %15 = vector.load %arg6[%c0_12, %c0_13] : memref<32x64xf32, #tpu.memory_space<vmem>>, vector<32x64xf32>
    %cst_14 = arith.constant dense<0.000000e+00> : vector<32x128xf32>
    %16 = tpu.matmul %15, %14, %cst_14 {dimension_numbers = #tpu.dot_dimension_numbers<[1], [0], [0], [1], [0, 0, 1, 1], [], []>} : vector<32x64xf32>, vector<64x128xf32>, vector<32x128xf32> -> vector<32x128xf32>
    %c0_15 = arith.constant 0 : index
    %c0_16 = arith.constant 0 : index
    %17 = vector.load %arg7[%c0_15, %c0_16] : memref<32x1xf32, #tpu.memory_space<vmem>>, vector<32x1xf32>
    %18 = vector.broadcast %17 : vector<32x1xf32> to vector<32x128xf32>
    %19 = arith.addf %16, %18 : vector<32x128xf32>
    %cst_17 = arith.constant 0.000000e+00 : f32
    %20 = vector.broadcast %cst_17 : f32 to vector<32x128xf32>
    %21 = arith.maximumf %19, %20 : vector<32x128xf32>
    %c0_18 = arith.constant 0 : index
    %c0_19 = arith.constant 0 : index
    %22 = vector.load %arg8[%c0_18, %c0_19] : memref<16x32xf32, #tpu.memory_space<vmem>>, vector<16x32xf32>
    %cst_20 = arith.constant dense<0.000000e+00> : vector<16x128xf32>
    %23 = tpu.matmul %22, %21, %cst_20 {dimension_numbers = #tpu.dot_dimension_numbers<[1], [0], [0], [1], [0, 0, 1, 1], [], []>} : vector<16x32xf32>, vector<32x128xf32>, vector<16x128xf32> -> vector<16x128xf32>
    %c0_21 = arith.constant 0 : index
    %c0_22 = arith.constant 0 : index
    %24 = vector.load %arg9[%c0_21, %c0_22] : memref<16x1xf32, #tpu.memory_space<vmem>>, vector<16x1xf32>
    %25 = vector.broadcast %24 : vector<16x1xf32> to vector<16x128xf32>
    %26 = arith.addf %23, %25 : vector<16x128xf32>
    %cst_23 = arith.constant 0.000000e+00 : f32
    %27 = vector.broadcast %cst_23 : f32 to vector<16x128xf32>
    %28 = arith.maximumf %26, %27 : vector<16x128xf32>
    %c0_24 = arith.constant 0 : index
    %c0_25 = arith.constant 0 : index
    %29 = vector.load %arg10[%c0_24, %c0_25] : memref<16x1xf32, #tpu.memory_space<vmem>>, vector<16x1xf32>
    %30 = vector.broadcast %29 : vector<16x1xf32> to vector<16x128xf32>
    %31 = arith.mulf %28, %30 : vector<16x128xf32>
    %cst_26 = arith.constant dense<0.000000e+00> : vector<128xf32>
    %32 = vector.multi_reduction <add>, %31, %cst_26 [0] : vector<16x128xf32> to vector<128xf32>
    %33 = vector.shape_cast %32 : vector<128xf32> to vector<1x128xf32>
    %c0_27 = arith.constant 0 : index
    %c0_28 = arith.constant 0 : index
    %34 = vector.load %arg11[%c0_27, %c0_28] : memref<1x1xf32, #tpu.memory_space<vmem>>, vector<1x1xf32>
    %35 = vector.broadcast %34 : vector<1x1xf32> to vector<1x128xf32>
    %36 = arith.addf %33, %35 : vector<1x128xf32>
    %c0_29 = arith.constant 0 : index
    %c0_30 = arith.constant 0 : index
    %37 = vector.load %arg12[%c0_29, %c0_30] : memref<1x128xf32, #tpu.memory_space<vmem>>, vector<1x128xf32>
    tpu.vector_store %arg12[%c0_29, %c0_30], %36 {strides = array<i32>} : memref<1x128xf32, #tpu.memory_space<vmem>>, vector<1x128xf32>,
    return
  }
  func.func @transform_0(%arg0: i32) -> (i32, i32) {
    %c0_i32 = arith.constant 0 : i32
    %c0_i32_0 = arith.constant 0 : i32
    return %arg0, %c0_i32 : i32, i32
  }
  func.func @transform_1(%arg0: i32) -> (i32, i32) {
    %c0_i32 = arith.constant 0 : i32
    %c0_i32_0 = arith.constant 0 : i32
    %c0_i32_1 = arith.constant 0 : i32
    return %c0_i32, %c0_i32_0 : i32, i32
  }
  func.func @transform_2(%arg0: i32) -> (i32, i32) {
    %c0_i32 = arith.constant 0 : i32
    %c0_i32_0 = arith.constant 0 : i32
    %c0_i32_1 = arith.constant 0 : i32
    return %c0_i32, %c0_i32_0 : i32, i32
  }
  func.func @transform_3(%arg0: i32) -> (i32, i32) {
    %c0_i32 = arith.constant 0 : i32
    %c0_i32_0 = arith.constant 0 : i32
    %c0_i32_1 = arith.constant 0 : i32
    return %c0_i32, %c0_i32_0 : i32, i32
  }
  func.func @transform_4(%arg0: i32) -> (i32, i32) {
    %c0_i32 = arith.constant 0 : i32
    %c0_i32_0 = arith.constant 0 : i32
    %c0_i32_1 = arith.constant 0 : i32
    return %c0_i32, %c0_i32_0 : i32, i32
  }
  func.func @transform_5(%arg0: i32) -> (i32, i32) {
    %c0_i32 = arith.constant 0 : i32
    %c0_i32_0 = arith.constant 0 : i32
    %c0_i32_1 = arith.constant 0 : i32
    return %c0_i32, %c0_i32_0 : i32, i32
  }
  func.func @transform_6(%arg0: i32) -> (i32, i32) {
    %c0_i32 = arith.constant 0 : i32
    %c0_i32_0 = arith.constant 0 : i32
    %c0_i32_1 = arith.constant 0 : i32
    return %c0_i32, %c0_i32_0 : i32, i32
  }
  func.func @transform_7(%arg0: i32) -> (i32, i32) {
    %c0_i32 = arith.constant 0 : i32
    %c0_i32_0 = arith.constant 0 : i32
    %c0_i32_1 = arith.constant 0 : i32
    return %c0_i32, %c0_i32_0 : i32, i32
  }
  func.func @transform_8(%arg0: i32) -> (i32, i32) {
    %c0_i32 = arith.constant 0 : i32
    %c0_i32_0 = arith.constant 0 : i32
    %c0_i32_1 = arith.constant 0 : i32
    return %c0_i32, %c0_i32_0 : i32, i32
  }
  func.func @transform_9(%arg0: i32) -> (i32, i32) {
    %c0_i32 = arith.constant 0 : i32
    %c0_i32_0 = arith.constant 0 : i32
    %c0_i32_1 = arith.constant 0 : i32
    return %c0_i32, %c0_i32_0 : i32, i32
  }
  func.func @transform_10(%arg0: i32) -> (i32, i32) {
    %c0_i32 = arith.constant 0 : i32
    %c0_i32_0 = arith.constant 0 : i32
    %c0_i32_1 = arith.constant 0 : i32
    return %c0_i32, %c0_i32_0 : i32, i32
  }
  func.func @transform_11(%arg0: i32) -> (i32, i32) {
    %c0_i32 = arith.constant 0 : i32
    %c0_i32_0 = arith.constant 0 : i32
    return %c0_i32, %arg0 : i32, i32
  }
}

</mosaic_0001>

<llo_original>
// kernel: tpu_custom_call.1
$region0: #{tpu_custom_call.1}
  #allocation0 [shape = 'u32[]', space=smem, size = 0x4, offset = 0x4, fixed_abs, tag = 'smem constant byte address 0x4 - core index']
  #allocation1 [shape = 'u32[144,128]{1,0:T(1,128)}', space=vmem, size = 0x12000, scoped, tag = 'internal scratch']
  #allocation2 [shape = 'f32[1,1]{1,0:T(1,128)S(1)}', space=vmem, size = 0x200, scoped, tag = 'scoped memory for tpu_custom_call.1']
  %s0 = inlined_call_operand.vmem [shape: f32[128,45], index: 0, kind: input, shape index: {}]
  %s1 = inlined_call_operand.vmem [shape: f32[64,45], index: 1, kind: input, shape index: {}]
  %s2 = inlined_call_operand.vmem [shape: f32[64,1], index: 2, kind: input, shape index: {}]
  %s3 = inlined_call_operand.vmem [shape: f32[64,64], index: 3, kind: input, shape index: {}]
  %s4 = inlined_call_operand.vmem [shape: f32[64,1], index: 4, kind: input, shape index: {}]
  %s5 = inlined_call_operand.vmem [shape: f32[32,64], index: 5, kind: input, shape index: {}]
  %s6 = inlined_call_operand.vmem [shape: f32[32,1], index: 6, kind: input, shape index: {}]
  %s7 = inlined_call_operand.vmem [shape: f32[16,32], index: 7, kind: input, shape index: {}]
  %s8 = inlined_call_operand.vmem [shape: f32[16,1], index: 8, kind: input, shape index: {}]
  %s9 = inlined_call_operand.vmem [shape: f32[16,1], index: 9, kind: input, shape index: {}]
  %s10 = inlined_call_operand.<no memory space> [shape: f32[1,1], index: 10, kind: input, shape index: {}]
  %s11 = inlined_call_operand.hbm [shape: f32[1,128], index: 11, kind: output, shape index: {}]
  %s12 = sld [smem:[#allocation0]]
  $region54: #{tpu_custom_call.1} parent=0
    _
  %s14 = ssub.s32 1, %s12
  %s15 = scalar_select 0, %s14, %s12
  %v16 = vstv %s10
  %17 = vst [vmem:[#allocation2] sm:$0x1] %v16
  $region1: #{tpu_custom_call.1} parent=0
    #allocation3 [shape = 'u8[512]{0}', space=vmem, size = 0x400, scoped, tag = 'output window, operand 0, single buffered']
    #allocation4 [shape = 's32[1]{0}', space=sflag, size = 0x4, scoped, tag = 'scoped memory for tpu_custom_call.1']
    %18 = vsyncpa [#allocation4], 0
    // Predicated region
    $region2: #{tpu_custom_call.1} parent=1 // pred_check
      _
    $region3: #{tpu_custom_call.1} parent=1 // pred_check_branch
      %20 = sbr.rel (0) target = $region5
    $region4: #{tpu_custom_call.1} parent=1 // pred_region
      _
    $region5: #{tpu_custom_call.1} parent=1 // pred_fallthru
      _
    // Predicated region
    $region6: #{tpu_custom_call.1} parent=1 // pred_check
      _
    $region7: #{tpu_custom_call.1} parent=1 // pred_check_branch
      %22 = sbr.rel (0) target = $region9
    $region8: #{tpu_custom_call.1} parent=1 // pred_region
      _
    $region9: #{tpu_custom_call.1} parent=1 // pred_fallthru
      _
    // Predicated region
    $region10: #{tpu_custom_call.1} parent=1 // pred_check
      _
    $region11: #{tpu_custom_call.1} parent=1 // pred_check_branch
      %24 = sbr.rel (0) target = $region13
    $region12: #{tpu_custom_call.1} parent=1 // pred_region
      _
    $region13: #{tpu_custom_call.1} parent=1 // pred_fallthru
      _
    // Predicated region
    $region14: #{tpu_custom_call.1} parent=1 // pred_check
      _
    $region15: #{tpu_custom_call.1} parent=1 // pred_check_branch
      %26 = sbr.rel (0) target = $region17
    $region16: #{tpu_custom_call.1} parent=1 // pred_region
      _
    $region17: #{tpu_custom_call.1} parent=1 // pred_fallthru
      _
    // Predicated region
    $region18: #{tpu_custom_call.1} parent=1 // pred_check
      _
    $region19: #{tpu_custom_call.1} parent=1 // pred_check_branch
      %28 = sbr.rel (0) target = $region21
    $region20: #{tpu_custom_call.1} parent=1 // pred_region
      _
    $region21: #{tpu_custom_call.1} parent=1 // pred_fallthru
      _
    // Predicated region
    $region22: #{tpu_custom_call.1} parent=1 // pred_check
      _
    $region23: #{tpu_custom_call.1} parent=1 // pred_check_branch
      %30 = sbr.rel (0) target = $region25
    $region24: #{tpu_custom_call.1} parent=1 // pred_region
      _
    $region25: #{tpu_custom_call.1} parent=1 // pred_fallthru
      _
    // Predicated region
    $region26: #{tpu_custom_call.1} parent=1 // pred_check
      _
    $region27: #{tpu_custom_call.1} parent=1 // pred_check_branch
      %32 = sbr.rel (0) target = $region29
    $region28: #{tpu_custom_call.1} parent=1 // pred_region
      _
    $region29: #{tpu_custom_call.1} parent=1 // pred_fallthru
      _
    // Predicated region
    $region30: #{tpu_custom_call.1} parent=1 // pred_check
      _
    $region31: #{tpu_custom_call.1} parent=1 // pred_check_branch
      %34 = sbr.rel (0) target = $region33
    $region32: #{tpu_custom_call.1} parent=1 // pred_region
      _
    $region33: #{tpu_custom_call.1} parent=1 // pred_fallthru
      _
    // Predicated region
    $region34: #{tpu_custom_call.1} parent=1 // pred_check
      _
    $region35: #{tpu_custom_call.1} parent=1 // pred_check_branch
      %36 = sbr.rel (0) target = $region37
    $region36: #{tpu_custom_call.1} parent=1 // pred_region
      _
    $region37: #{tpu_custom_call.1} parent=1 // pred_fallthru
      _
    // Predicated region
    $region38: #{tpu_custom_call.1} parent=1 // pred_check
      _
    $region39: #{tpu_custom_call.1} parent=1 // pred_check_branch
      %38 = sbr.rel (0) target = $region41
    $region40: #{tpu_custom_call.1} parent=1 // pred_region
      _
    $region41: #{tpu_custom_call.1} parent=1 // pred_fallthru
      _
    // Predicated region
    $region42: #{tpu_custom_call.1} parent=1 // pred_check
      _
    $region43: #{tpu_custom_call.1} parent=1 // pred_check_branch
      %40 = sbr.rel (0) target = $region45
    $region44: #{tpu_custom_call.1} parent=1 // pred_region
      _
    $region45: #{tpu_custom_call.1} parent=1 // pred_fallthru
      _
    %v41 = vld [vmem:[%s0] sm:$0xff]
    %v42 = vld [vmem:[%s0 + $0x8] sm:$0xff]
    %v43 = vld [vmem:[%s0 + $0x10] sm:$0xff]
    %v44 = vld [vmem:[%s0 + $0x18] sm:$0xff]
    %v45 = vld [vmem:[%s0 + $0x20] sm:$0xff]
    %v46 = vld [vmem:[%s0 + $0x28] sm:$0xff]
    %v47 = vld [vmem:[%s0 + $0x30] sm:$0xff]
    %v48 = vld [vmem:[%s0 + $0x38] sm:$0xff]
    %v49 = vld [vmem:[%s0 + $0x40] sm:$0xff]
    %v50 = vld [vmem:[%s0 + $0x48] sm:$0xff]
    %v51 = vld [vmem:[%s0 + $0x50] sm:$0xff]
    %v52 = vld [vmem:[%s0 + $0x58] sm:$0xff]
    %v53 = vld [vmem:[%s0 + $0x60] sm:$0xff]
    %v54 = vld [vmem:[%s0 + $0x68] sm:$0xff]
    %v55 = vld [vmem:[%s0 + $0x70] sm:$0xff]
    %v56 = vld [vmem:[%s0 + $0x78] sm:$0xff]
    %v57 = vld [vmem:[%s1] sm:$0xff]
    %v58 = vld [vmem:[%s1 + $0x8] sm:$0xff]
    %v59 = vld [vmem:[%s1 + $0x10] sm:$0xff]
    %v60 = vld [vmem:[%s1 + $0x18] sm:$0xff]
    %v61 = vld [vmem:[%s1 + $0x20] sm:$0xff]
    %v62 = vld [vmem:[%s1 + $0x28] sm:$0xff]
    %v63 = vld [vmem:[%s1 + $0x30] sm:$0xff]
    %v64 = vld [vmem:[%s1 + $0x38] sm:$0xff]
    %v65 = vld [vmem:[%s2] sm:$0xff]
    %v66 = vld [vmem:[%s2 + $0x8] sm:$0xff]
    %v67 = vld [vmem:[%s2 + $0x10] sm:$0xff]
    %v68 = vld [vmem:[%s2 + $0x18] sm:$0xff]
    %v69 = vld [vmem:[%s2 + $0x20] sm:$0xff]
    %v70 = vld [vmem:[%s2 + $0x28] sm:$0xff]
    %v71 = vld [vmem:[%s2 + $0x30] sm:$0xff]
    %v72 = vld [vmem:[%s2 + $0x38] sm:$0xff]
    %74 = vset.pattern.permute.xlu0 0
    %75 = vperm.xlu0 %74, %v65
    %v76 = vpop.permute.xlu0 %75
    %79 = vset.pattern.permute.xlu0 0
    %80 = vperm.xlu0 %79, %v66
    %v81 = vpop.permute.xlu0 %80
    %84 = vset.pattern.permute.xlu0 0
    %85 = vperm.xlu0 %84, %v67
    %v86 = vpop.permute.xlu0 %85
    %89 = vset.pattern.permute.xlu0 0
    %90 = vperm.xlu0 %89, %v68
    %v91 = vpop.permute.xlu0 %90
    %94 = vset.pattern.permute.xlu0 0
    %95 = vperm.xlu0 %94, %v69
    %v96 = vpop.permute.xlu0 %95
    %99 = vset.pattern.permute.xlu0 0
    %100 = vperm.xlu0 %99, %v70
    %v101 = vpop.permute.xlu0 %100
    %104 = vset.pattern.permute.xlu0 0
    %105 = vperm.xlu0 %104, %v71
    %v106 = vpop.permute.xlu0 %105
    %109 = vset.pattern.permute.xlu0 0
    %110 = vperm.xlu0 %109, %v72
    %v111 = vpop.permute.xlu0 %110
    %vm113 = vcmask 367616
    %v115 = vsel %vm113, %v57, 0
    %v118 = vsel %vm113, %v58, 0
    %v121 = vsel %vm113, %v59, 0
    %v124 = vsel %vm113, %v60, 0
    %v127 = vsel %vm113, %v61, 0
    %v130 = vsel %vm113, %v62, 0
    %v133 = vsel %vm113, %v63, 0
    %v136 = vsel %vm113, %v64, 0
    %v139 = vsel %vm113, %v41, 0
    %v142 = vsel %vm113, %v42, 0
    %v145 = vsel %vm113, %v43, 0
    %v148 = vsel %vm113, %v44, 0
    %v151 = vsel %vm113, %v45, 0
    %v154 = vsel %vm113, %v46, 0
    %v157 = vsel %vm113, %v47, 0
    %v160 = vsel %vm113, %v48, 0
    %v163 = vsel %vm113, %v49, 0
    %v166 = vsel %vm113, %v50, 0
    %v169 = vsel %vm113, %v51, 0
    %v172 = vsel %vm113, %v52, 0
    %v175 = vsel %vm113, %v53, 0
    %v178 = vsel %vm113, %v54, 0
    %v181 = vsel %vm113, %v55, 0
    %v184 = vsel %vm113, %v56, 0
    %186 = vmatprep.subr.mxu0 0.0
    %187 = vmatpush1.xpose.msra.mxu0 %v139
    %188 = vmatprep.subr.mxu0 0.0
    %189 = vmatpush1.xpose.msra.mxu0 %v142
    %190 = vmatprep.subr.mxu0 0.0
    %191 = vmatpush1.xpose.msra.mxu0 %v145
    %192 = vmatprep.subr.mxu0 0.0
    %193 = vmatpush1.xpose.msra.mxu0 %v148
    %194 = vmatprep.subr.mxu0 0.0
    %195 = vmatpush1.xpose.msra.mxu0 %v151
    %196 = vmatprep.subr.mxu0 0.0
    %197 = vmatpush1.xpose.msra.mxu0 %v154
    %198 = vmatprep.subr.mxu0 0.0
    %199 = vmatpush1.xpose.msra.mxu0 %v157
    %200 = vmatprep.subr.mxu0 0.0
    %201 = vmatpush1.xpose.msra.mxu0 %v160
    %202 = vmatprep.subr.mxu0 0.0
    %203 = vmatpush1.xpose.msra.mxu0 %v163
    %204 = vmatprep.subr.mxu0 0.0
    %205 = vmatpush1.xpose.msra.mxu0 %v166
    %206 = vmatprep.subr.mxu0 0.0
    %207 = vmatpush1.xpose.msra.mxu0 %v169
    %208 = vmatprep.subr.mxu0 0.0
    %209 = vmatpush1.xpose.msra.mxu0 %v172
    %210 = vmatprep.subr.mxu0 0.0
    %211 = vmatpush1.xpose.msra.mxu0 %v175
    %212 = vmatprep.subr.mxu0 0.0
    %213 = vmatpush1.xpose.msra.mxu0 %v178
    %214 = vmatprep.subr.mxu0 0.0
    %215 = vmatpush1.xpose.msra.mxu0 %v181
    %216 = vmatprep.subr.mxu0 0.0
    %217 = vmatpush1.xpose.msra.mxu0 %v184
    %218 = vmatprep.subr.mxu0 0.0
    %219 = vmatpush1.xpose.msra.mxu0 0.0
    %220 = vmatprep.subr.mxu0 0.0
    %221 = vmatpush1.xpose.msra.mxu0 0.0
    %222 = vmatprep.subr.mxu0 0.0
    %223 = vmatpush1.xpose.msra.mxu0 0.0
    %224 = vmatprep.subr.mxu0 0.0
    %225 = vmatpush1.xpose.msra.mxu0 0.0
    %226 = vmatprep.subr.mxu0 0.0
    %227 = vmatpush1.xpose.msra.mxu0 0.0
    %228 = vmatprep.subr.mxu0 0.0
    %229 = vmatpush1.xpose.msra.mxu0 0.0
    %230 = vmatprep.subr.mxu0 0.0
    %231 = vmatpush1.xpose.msra.mxu0 0.0
    %232 = vmatprep.subr.mxu0 0.0
    %233 = vmatpush1.xpose.msra.mxu0 0.0
    %234 = vmatprep.subr.mxu0 0.0
    %235 = vmatpush1.xpose.msra.mxu0 0.0
    %236 = vmatprep.subr.mxu0 0.0
    %237 = vmatpush1.xpose.msra.mxu0 0.0
    %238 = vmatprep.subr.mxu0 0.0
    %239 = vmatpush1.xpose.msra.mxu0 0.0
    %240 = vmatprep.subr.mxu0 0.0
    %241 = vmatpush1.xpose.msra.mxu0 0.0
    %242 = vmatprep.subr.mxu0 0.0
    %243 = vmatpush1.xpose.msra.mxu0 0.0
    %244 = vmatprep.subr.mxu0 0.0
    %245 = vmatpush1.xpose.msra.mxu0 0.0
    %246 = vmatprep.subr.mxu0 0.0
    %247 = vmatpush1.xpose.msra.mxu0 0.0
    %248 = vmatprep.subr.mxu0 0.0
    %249 = vmatpush1.xpose.msra.mxu0 0.0
    %250 = vmatprep.mubr.f32.mxu0 0.0
    %251 = vmatmul.mubr.f32.gmra.mrb[0].mxu0 %v115
    %v252 = vpop.f32.mrb[0].mxu0
    %v253 = vadd.f32 %v76, %v252
    %v254 = vpop.f32.mrb[0].mxu0
    %255 = vmatprep.mubr.f32.mxu0 0.0
    %256 = vmatmul.mubr.f32.gmra.mrb[0].mxu0 %v118
    %v257 = vpop.f32.mrb[0].mxu0
    %v258 = vadd.f32 %v81, %v257
    %v259 = vpop.f32.mrb[0].mxu0
    %260 = vmatprep.mubr.f32.mxu0 0.0
    %261 = vmatmul.mubr.f32.gmra.mrb[0].mxu0 %v121
    %v262 = vpop.f32.mrb[0].mxu0
    %v263 = vadd.f32 %v86, %v262
    %v264 = vpop.f32.mrb[0].mxu0
    %265 = vmatprep.mubr.f32.mxu0 0.0
    %266 = vmatmul.mubr.f32.gmra.mrb[0].mxu0 %v124
    %v267 = vpop.f32.mrb[0].mxu0
    %v268 = vadd.f32 %v91, %v267
    %v269 = vpop.f32.mrb[0].mxu0
    %270 = vmatprep.mubr.f32.mxu0 0.0
    %271 = vmatmul.mubr.f32.gmra.mrb[0].mxu0 %v127
    %v272 = vpop.f32.mrb[0].mxu0
    %v273 = vadd.f32 %v96, %v272
    %v274 = vpop.f32.mrb[0].mxu0
    %275 = vmatprep.mubr.f32.mxu0 0.0
    %276 = vmatmul.mubr.f32.gmra.mrb[0].mxu0 %v130
    %v277 = vpop.f32.mrb[0].mxu0
    %v278 = vadd.f32 %v101, %v277
    %v279 = vpop.f32.mrb[0].mxu0
    %280 = vmatprep.mubr.f32.mxu0 0.0
    %281 = vmatmul.mubr.f32.gmra.mrb[0].mxu0 %v133
    %v282 = vpop.f32.mrb[0].mxu0
    %v283 = vadd.f32 %v106, %v282
    %v284 = vpop.f32.mrb[0].mxu0
    %285 = vmatprep.mubr.f32.mxu0 0.0
    %286 = vmatmul.mubr.f32.gmra.mrb[0].mxu0 %v136
    %v287 = vpop.f32.mrb[0].mxu0
    %v288 = vadd.f32 %v111, %v287
    %v289 = vpop.f32.mrb[0].mxu0
    %290 = vdwg.mxu0
    %v291 = vmax.f32 %v253, 0.0
    %v292 = vmax.f32 %v258, 0.0
    %v293 = vmax.f32 %v263, 0.0
    %v294 = vmax.f32 %v268, 0.0
    %v295 = vmax.f32 %v273, 0.0
    %v296 = vmax.f32 %v278, 0.0
    %v297 = vmax.f32 %v283, 0.0
    %v298 = vmax.f32 %v288, 0.0
    %v299 = vld [vmem:[%s3] sm:$0xff]
    %v300 = vld [vmem:[%s3 + $0x8] sm:$0xff]
    %v301 = vld [vmem:[%s3 + $0x10] sm:$0xff]
    %v302 = vld [vmem:[%s3 + $0x18] sm:$0xff]
    %v303 = vld [vmem:[%s3 + $0x20] sm:$0xff]
    %v304 = vld [vmem:[%s3 + $0x28] sm:$0xff]
    %v305 = vld [vmem:[%s3 + $0x30] sm:$0xff]
    %v306 = vld [vmem:[%s3 + $0x38] sm:$0xff]
    %v307 = vld [vmem:[%s4] sm:$0xff]
    %v308 = vld [vmem:[%s4 + $0x8] sm:$0xff]
    %v309 = vld [vmem:[%s4 + $0x10] sm:$0xff]
    %v310 = vld [vmem:[%s4 + $0x18] sm:$0xff]
    %v311 = vld [vmem:[%s4 + $0x20] sm:$0xff]
    %v312 = vld [vmem:[%s4 + $0x28] sm:$0xff]
    %v313 = vld [vmem:[%s4 + $0x30] sm:$0xff]
    %v314 = vld [vmem:[%s4 + $0x38] sm:$0xff]
    %316 = vset.pattern.permute.xlu0 0
    %317 = vperm.xlu0 %316, %v307
    %v318 = vpop.permute.xlu0 %317
    %321 = vset.pattern.permute.xlu0 0
    %322 = vperm.xlu0 %321, %v308
    %v323 = vpop.permute.xlu0 %322
    %326 = vset.pattern.permute.xlu0 0
    %327 = vperm.xlu0 %326, %v309
    %v328 = vpop.permute.xlu0 %327
    %331 = vset.pattern.permute.xlu0 0
    %332 = vperm.xlu0 %331, %v310
    %v333 = vpop.permute.xlu0 %332
    %336 = vset.pattern.permute.xlu0 0
    %337 = vperm.xlu0 %336, %v311
    %v338 = vpop.permute.xlu0 %337
    %341 = vset.pattern.permute.xlu0 0
    %342 = vperm.xlu0 %341, %v312
    %v343 = vpop.permute.xlu0 %342
    %346 = vset.pattern.permute.xlu0 0
    %347 = vperm.xlu0 %346, %v313
    %v348 = vpop.permute.xlu0 %347
    %351 = vset.pattern.permute.xlu0 0
    %352 = vperm.xlu0 %351, %v314
    %v353 = vpop.permute.xlu0 %352
    %vm355 = vcmask 523264
    %v357 = vsel %vm355, %v299, 0
    %v360 = vsel %vm355, %v300, 0
    %v363 = vsel %vm355, %v301, 0
    %v366 = vsel %vm355, %v302, 0
    %v369 = vsel %vm355, %v303, 0
    %v372 = vsel %vm355, %v304, 0
    %v375 = vsel %vm355, %v305, 0
    %v378 = vsel %vm355, %v306, 0
    %380 = vmatprep.subr.mxu0 0.0
    %381 = vmatpush1.msra.mxu0 %v291
    %382 = vmatprep.subr.mxu0 0.0
    %383 = vmatpush1.msra.mxu0 %v292
    %384 = vmatprep.subr.mxu0 0.0
    %385 = vmatpush1.msra.mxu0 %v293
    %386 = vmatprep.subr.mxu0 0.0
    %387 = vmatpush1.msra.mxu0 %v294
    %388 = vmatprep.subr.mxu0 0.0
    %389 = vmatpush1.msra.mxu0 %v295
    %390 = vmatprep.subr.mxu0 0.0
    %391 = vmatpush1.msra.mxu0 %v296
    %392 = vmatprep.subr.mxu0 0.0
    %393 = vmatpush1.msra.mxu0 %v297
    %394 = vmatprep.subr.mxu0 0.0
    %395 = vmatpush1.msra.mxu0 %v298
    %396 = vmatprep.subr.mxu0 0.0
    %397 = vmatpush1.msra.mxu0 0.0
    %398 = vmatprep.subr.mxu0 0.0
    %399 = vmatpush1.msra.mxu0 0.0
    %400 = vmatprep.subr.mxu0 0.0
    %401 = vmatpush1.msra.mxu0 0.0
    %402 = vmatprep.subr.mxu0 0.0
    %403 = vmatpush1.msra.mxu0 0.0
    %404 = vmatprep.subr.mxu0 0.0
    %405 = vmatpush1.msra.mxu0 0.0
    %406 = vmatprep.subr.mxu0 0.0
    %407 = vmatpush1.msra.mxu0 0.0
    %408 = vmatprep.subr.mxu0 0.0
    %409 = vmatpush1.msra.mxu0 0.0
    %410 = vmatprep.subr.mxu0 0.0
    %411 = vmatpush1.msra.mxu0 0.0
    %412 = vmatprep.subr.mxu0 0.0
    %413 = vmatpush1.msra.mxu0 0.0
    %414 = vmatprep.subr.mxu0 0.0
    %415 = vmatpush1.msra.mxu0 0.0
    %416 = vmatprep.subr.mxu0 0.0
    %417 = vmatpush1.msra.mxu0 0.0
    %418 = vmatprep.subr.mxu0 0.0
    %419 = vmatpush1.msra.mxu0 0.0
    %420 = vmatprep.subr.mxu0 0.0
    %421 = vmatpush1.msra.mxu0 0.0
    %422 = vmatprep.subr.mxu0 0.0
    %423 = vmatpush1.msra.mxu0 0.0
    %424 = vmatprep.subr.mxu0 0.0
    %425 = vmatpush1.msra.mxu0 0.0
    %426 = vmatprep.subr.mxu0 0.0
    %427 = vmatpush1.msra.mxu0 0.0
    %428 = vmatprep.subr.mxu0 0.0
    %429 = vmatpush1.msra.mxu0 0.0
    %430 = vmatprep.subr.mxu0 0.0
    %431 = vmatpush1.msra.mxu0 0.0
    %432 = vmatprep.subr.mxu0 0.0
    %433 = vmatpush1.msra.mxu0 0.0
    %434 = vmatprep.subr.mxu0 0.0
    %435 = vmatpush1.msra.mxu0 0.0
    %436 = vmatprep.subr.mxu0 0.0
    %437 = vmatpush1.msra.mxu0 0.0
    %438 = vmatprep.subr.mxu0 0.0
    %439 = vmatpush1.msra.mxu0 0.0
    %440 = vmatprep.subr.mxu0 0.0
    %441 = vmatpush1.msra.mxu0 0.0
    %442 = vmatprep.subr.mxu0 0.0
    %443 = vmatpush1.msra.mxu0 0.0
    %444 = vmatprep.mubr.f32.mxu0 0.0
    %445 = vmatmul.mubr.f32.gmra.mrb[0].mxu0 %v357
    %v446 = vpop.f32.mrb[0].mxu0
    %v447 = vadd.f32 %v318, %v446
    %v448 = vpop.f32.mrb[0].mxu0
    %449 = vmatprep.mubr.f32.mxu0 0.0
    %450 = vmatmul.mubr.f32.gmra.mrb[0].mxu0 %v360
    %v451 = vpop.f32.mrb[0].mxu0
    %v452 = vadd.f32 %v323, %v451
    %v453 = vpop.f32.mrb[0].mxu0
    %454 = vmatprep.mubr.f32.mxu0 0.0
    %455 = vmatmul.mubr.f32.gmra.mrb[0].mxu0 %v363
    %v456 = vpop.f32.mrb[0].mxu0
    %v457 = vadd.f32 %v328, %v456
    %v458 = vpop.f32.mrb[0].mxu0
    %459 = vmatprep.mubr.f32.mxu0 0.0
    %460 = vmatmul.mubr.f32.gmra.mrb[0].mxu0 %v366
    %v461 = vpop.f32.mrb[0].mxu0
    %v462 = vadd.f32 %v333, %v461
    %v463 = vpop.f32.mrb[0].mxu0
    %464 = vmatprep.mubr.f32.mxu0 0.0
    %465 = vmatmul.mubr.f32.gmra.mrb[0].mxu0 %v369
    %v466 = vpop.f32.mrb[0].mxu0
    %v467 = vadd.f32 %v338, %v466
    %v468 = vpop.f32.mrb[0].mxu0
    %469 = vmatprep.mubr.f32.mxu0 0.0
    %470 = vmatmul.mubr.f32.gmra.mrb[0].mxu0 %v372
    %v471 = vpop.f32.mrb[0].mxu0
    %v472 = vadd.f32 %v343, %v471
    %v473 = vpop.f32.mrb[0].mxu0
    %474 = vmatprep.mubr.f32.mxu0 0.0
    %475 = vmatmul.mubr.f32.gmra.mrb[0].mxu0 %v375
    %v476 = vpop.f32.mrb[0].mxu0
    %v477 = vadd.f32 %v348, %v476
    %v478 = vpop.f32.mrb[0].mxu0
    %479 = vmatprep.mubr.f32.mxu0 0.0
    %480 = vmatmul.mubr.f32.gmra.mrb[0].mxu0 %v378
    %v481 = vpop.f32.mrb[0].mxu0
    %v482 = vadd.f32 %v353, %v481
    %v483 = vpop.f32.mrb[0].mxu0
    %484 = vdwg.mxu0
    %v485 = vmax.f32 %v447, 0.0
    %v486 = vmax.f32 %v452, 0.0
    %v487 = vmax.f32 %v457, 0.0
    %v488 = vmax.f32 %v462, 0.0
    %v489 = vmax.f32 %v467, 0.0
    %v490 = vmax.f32 %v472, 0.0
    %v491 = vmax.f32 %v477, 0.0
    %v492 = vmax.f32 %v482, 0.0
    %v493 = vld [vmem:[%s5] sm:$0xff]
    %v494 = vld [vmem:[%s5 + $0x8] sm:$0xff]
    %v495 = vld [vmem:[%s5 + $0x10] sm:$0xff]
    %v496 = vld [vmem:[%s5 + $0x18] sm:$0xff]
    %v497 = vld [vmem:[%s6] sm:$0xff]
    %v498 = vld [vmem:[%s6 + $0x8] sm:$0xff]
    %v499 = vld [vmem:[%s6 + $0x10] sm:$0xff]
    %v500 = vld [vmem:[%s6 + $0x18] sm:$0xff]
    %502 = vset.pattern.permute.xlu0 0
    %503 = vperm.xlu0 %502, %v497
    %v504 = vpop.permute.xlu0 %503
    %507 = vset.pattern.permute.xlu0 0
    %508 = vperm.xlu0 %507, %v498
    %v509 = vpop.permute.xlu0 %508
    %512 = vset.pattern.permute.xlu0 0
    %513 = vperm.xlu0 %512, %v499
    %v514 = vpop.permute.xlu0 %513
    %517 = vset.pattern.permute.xlu0 0
    %518 = vperm.xlu0 %517, %v500
    %v519 = vpop.permute.xlu0 %518
    %v522 = vsel %vm355, %v493, 0
    %v525 = vsel %vm355, %v494, 0
    %v528 = vsel %vm355, %v495, 0
    %v531 = vsel %vm355, %v496, 0
    %533 = vmatprep.subr.mxu0 0.0
    %534 = vmatpush1.msra.mxu0 %v485
    %535 = vmatprep.subr.mxu0 0.0
    %536 = vmatpush1.msra.mxu0 %v486
    %537 = vmatprep.subr.mxu0 0.0
    %538 = vmatpush1.msra.mxu0 %v487
    %539 = vmatprep.subr.mxu0 0.0
    %540 = vmatpush1.msra.mxu0 %v488
    %541 = vmatprep.subr.mxu0 0.0
    %542 = vmatpush1.msra.mxu0 %v489
    %543 = vmatprep.subr.mxu0 0.0
    %544 = vmatpush1.msra.mxu0 %v490
    %545 = vmatprep.subr.mxu0 0.0
    %546 = vmatpush1.msra.mxu0 %v491
    %547 = vmatprep.subr.mxu0 0.0
    %548 = vmatpush1.msra.mxu0 %v492
    %549 = vmatprep.subr.mxu0 0.0
    %550 = vmatpush1.msra.mxu0 0.0
    %551 = vmatprep.subr.mxu0 0.0
    %552 = vmatpush1.msra.mxu0 0.0
    %553 = vmatprep.subr.mxu0 0.0
    %554 = vmatpush1.msra.mxu0 0.0
    %555 = vmatprep.subr.mxu0 0.0
    %556 = vmatpush1.msra.mxu0 0.0
    %557 = vmatprep.subr.mxu0 0.0
    %558 = vmatpush1.msra.mxu0 0.0
    %559 = vmatprep.subr.mxu0 0.0
    %560 = vmatpush1.msra.mxu0 0.0
    %561 = vmatprep.subr.mxu0 0.0
    %562 = vmatpush1.msra.mxu0 0.0
    %563 = vmatprep.subr.mxu0 0.0
    %564 = vmatpush1.msra.mxu0 0.0
    %565 = vmatprep.subr.mxu0 0.0
    %566 = vmatpush1.msra.mxu0 0.0
    %567 = vmatprep.subr.mxu0 0.0
    %568 = vmatpush1.msra.mxu0 0.0
    %569 = vmatprep.subr.mxu0 0.0
    %570 = vmatpush1.msra.mxu0 0.0
    %571 = vmatprep.subr.mxu0 0.0
    %572 = vmatpush1.msra.mxu0 0.0
    %573 = vmatprep.subr.mxu0 0.0
    %574 = vmatpush1.msra.mxu0 0.0
    %575 = vmatprep.subr.mxu0 0.0
    %576 = vmatpush1.msra.mxu0 0.0
    %577 = vmatprep.subr.mxu0 0.0
    %578 = vmatpush1.msra.mxu0 0.0
    %579 = vmatprep.subr.mxu0 0.0
    %580 = vmatpush1.msra.mxu0 0.0
    %581 = vmatprep.subr.mxu0 0.0
    %582 = vmatpush1.msra.mxu0 0.0
    %583 = vmatprep.subr.mxu0 0.0
    %584 = vmatpush1.msra.mxu0 0.0
    %585 = vmatprep.subr.mxu0 0.0
    %586 = vmatpush1.msra.mxu0 0.0
    %587 = vmatprep.subr.mxu0 0.0
    %588 = vmatpush1.msra.mxu0 0.0
    %589 = vmatprep.subr.mxu0 0.0
    %590 = vmatpush1.msra.mxu0 0.0
    %591 = vmatprep.subr.mxu0 0.0
    %592 = vmatpush1.msra.mxu0 0.0
    %593 = vmatprep.subr.mxu0 0.0
    %594 = vmatpush1.msra.mxu0 0.0
    %595 = vmatprep.subr.mxu0 0.0
    %596 = vmatpush1.msra.mxu0 0.0
    %597 = vmatprep.mubr.f32.mxu0 0.0
    %598 = vmatmul.mubr.f32.gmra.mrb[0].mxu0 %v522
    %v599 = vpop.f32.mrb[0].mxu0
    %v600 = vadd.f32 %v504, %v599
    %v601 = vpop.f32.mrb[0].mxu0
    %602 = vmatprep.mubr.f32.mxu0 0.0
    %603 = vmatmul.mubr.f32.gmra.mrb[0].mxu0 %v525
    %v604 = vpop.f32.mrb[0].mxu0
    %v605 = vadd.f32 %v509, %v604
    %v606 = vpop.f32.mrb[0].mxu0
    %607 = vmatprep.mubr.f32.mxu0 0.0
    %608 = vmatmul.mubr.f32.gmra.mrb[0].mxu0 %v528
    %v609 = vpop.f32.mrb[0].mxu0
    %v610 = vadd.f32 %v514, %v609
    %v611 = vpop.f32.mrb[0].mxu0
    %612 = vmatprep.mubr.f32.mxu0 0.0
    %613 = vmatmul.mubr.f32.gmra.mrb[0].mxu0 %v531
    %v614 = vpop.f32.mrb[0].mxu0
    %v615 = vadd.f32 %v519, %v614
    %v616 = vpop.f32.mrb[0].mxu0
    %617 = vdwg.mxu0
    %v618 = vmax.f32 %v600, 0.0
    %v619 = vmax.f32 %v605, 0.0
    %v620 = vmax.f32 %v610, 0.0
    %v621 = vmax.f32 %v615, 0.0
    %v622 = vld [vmem:[%s7] sm:$0xff]
    %v623 = vld [vmem:[%s7 + $0x8] sm:$0xff]
    %v624 = vld [vmem:[%s8] sm:$0xff]
    %v625 = vld [vmem:[%s8 + $0x8] sm:$0xff]
    %627 = vset.pattern.permute.xlu0 0
    %628 = vperm.xlu0 %627, %v624
    %v629 = vpop.permute.xlu0 %628
    %632 = vset.pattern.permute.xlu0 0
    %633 = vperm.xlu0 %632, %v625
    %v634 = vpop.permute.xlu0 %633
    %vm636 = vcmask 261120
    %v638 = vsel %vm636, %v622, 0
    %v641 = vsel %vm636, %v623, 0
    %643 = vmatprep.subr.mxu0 0.0
    %644 = vmatpush1.msra.mxu0 %v618
    %645 = vmatprep.subr.mxu0 0.0
    %646 = vmatpush1.msra.mxu0 %v619
    %647 = vmatprep.subr.mxu0 0.0
    %648 = vmatpush1.msra.mxu0 %v620
    %649 = vmatprep.subr.mxu0 0.0
    %650 = vmatpush1.msra.mxu0 %v621
    %651 = vmatprep.subr.mxu0 0.0
    %652 = vmatpush1.msra.mxu0 0.0
    %653 = vmatprep.subr.mxu0 0.0
    %654 = vmatpush1.msra.mxu0 0.0
    %655 = vmatprep.subr.mxu0 0.0
    %656 = vmatpush1.msra.mxu0 0.0
    %657 = vmatprep.subr.mxu0 0.0
    %658 = vmatpush1.msra.mxu0 0.0
    %659 = vmatprep.subr.mxu0 0.0
    %660 = vmatpush1.msra.mxu0 0.0
    %661 = vmatprep.subr.mxu0 0.0
    %662 = vmatpush1.msra.mxu0 0.0
    %663 = vmatprep.subr.mxu0 0.0
    %664 = vmatpush1.msra.mxu0 0.0
    %665 = vmatprep.subr.mxu0 0.0
    %666 = vmatpush1.msra.mxu0 0.0
    %667 = vmatprep.subr.mxu0 0.0
    %668 = vmatpush1.msra.mxu0 0.0
    %669 = vmatprep.subr.mxu0 0.0
    %670 = vmatpush1.msra.mxu0 0.0
    %671 = vmatprep.subr.mxu0 0.0
    %672 = vmatpush1.msra.mxu0 0.0
    %673 = vmatprep.subr.mxu0 0.0
    %674 = vmatpush1.msra.mxu0 0.0
    %675 = vmatprep.subr.mxu0 0.0
    %676 = vmatpush1.msra.mxu0 0.0
    %677 = vmatprep.subr.mxu0 0.0
    %678 = vmatpush1.msra.mxu0 0.0
    %679 = vmatprep.subr.mxu0 0.0
    %680 = vmatpush1.msra.mxu0 0.0
    %681 = vmatprep.subr.mxu0 0.0
    %682 = vmatpush1.msra.mxu0 0.0
    %683 = vmatprep.subr.mxu0 0.0
    %684 = vmatpush1.msra.mxu0 0.0
    %685 = vmatprep.subr.mxu0 0.0
    %686 = vmatpush1.msra.mxu0 0.0
    %687 = vmatprep.subr.mxu0 0.0
    %688 = vmatpush1.msra.mxu0 0.0
    %689 = vmatprep.subr.mxu0 0.0
    %690 = vmatpush1.msra.mxu0 0.0
    %691 = vmatprep.subr.mxu0 0.0
    %692 = vmatpush1.msra.mxu0 0.0
    %693 = vmatprep.subr.mxu0 0.0
    %694 = vmatpush1.msra.mxu0 0.0
    %695 = vmatprep.subr.mxu0 0.0
    %696 = vmatpush1.msra.mxu0 0.0
    %697 = vmatprep.subr.mxu0 0.0
    %698 = vmatpush1.msra.mxu0 0.0
    %699 = vmatprep.subr.mxu0 0.0
    %700 = vmatpush1.msra.mxu0 0.0
    %701 = vmatprep.subr.mxu0 0.0
    %702 = vmatpush1.msra.mxu0 0.0
    %703 = vmatprep.subr.mxu0 0.0
    %704 = vmatpush1.msra.mxu0 0.0
    %705 = vmatprep.subr.mxu0 0.0
    %706 = vmatpush1.msra.mxu0 0.0
    %707 = vmatprep.mubr.f32.mxu0 0.0
    %708 = vmatmul.mubr.f32.gmra.mrb[0].mxu0 %v638
    %v709 = vpop.f32.mrb[0].mxu0
    %v710 = vadd.f32 %v629, %v709
    %v711 = vpop.f32.mrb[0].mxu0
    %712 = vmatprep.mubr.f32.mxu0 0.0
    %713 = vmatmul.mubr.f32.gmra.mrb[0].mxu0 %v641
    %v714 = vpop.f32.mrb[0].mxu0
    %v715 = vadd.f32 %v634, %v714
    %v716 = vpop.f32.mrb[0].mxu0
    %717 = vdwg.mxu0
    %v718 = vmax.f32 %v710, 0.0
    %v719 = vmax.f32 %v715, 0.0
    %v720 = vld [vmem:[%s9] sm:$0xff]
    %v721 = vld [vmem:[%s9 + $0x8] sm:$0xff]
    %723 = vset.pattern.permute.xlu0 0
    %724 = vperm.xlu0 %723, %v720
    %v725 = vpop.permute.xlu0 %724
    %728 = vset.pattern.permute.xlu0 0
    %729 = vperm.xlu0 %728, %v721
    %v730 = vpop.permute.xlu0 %729
    %v732 = vmul.f32 %v718, %v725
    %v733 = vmul.f32 %v719, %v730
    %v734 = vadd.f32 %v732, %v733
    %v735 = vrot.slane %v734, 4
    %v736 = vadd.f32 %v734, %v735
    %v737 = vrot.slane %v736, 2
    %v738 = vadd.f32 %v736, %v737
    %v739 = vrot.slane %v738, 1
    %v740 = vadd.f32 %v738, %v739
    %v741 = vld [vmem:[#allocation2] sm:$0x1]
    %743 = vset.pattern.permute.xlu0 0
    %744 = vperm.xlu0 %743, %v741
    %v745 = vpop.permute.xlu0 %744
    %v747 = vlaneseq
    %v748 = vshrl.u32 %v747, 7
    %v749 = vsub.s32 0, %v748
    %v750 = vrot.slane %v745, %v749
    %v751 = vadd.f32 %v740, %v750
    %752 = vst [vmem:[#allocation3] sm:$0x1] %v751
    // Predicated region
    $region46: #{tpu_custom_call.1} parent=1 // pred_check
      _
    $region47: #{tpu_custom_call.1} parent=1 // pred_check_branch
      %754 = sbr.rel (0) target = $region49
    $region48: #{tpu_custom_call.1} parent=1 // pred_region
      %s756 = ssub.s32 16, 16
      %757 = vsyncadd [#allocation4], %s756
      %s759 = sshll.u32 [#allocation3], 4
      %s760 = int_to_ptr.vmem [resolvable:$true] %s759
      %762 = dma.vmem_to_hbm [thread:$0]  %s760, 16, %s11, [#allocation4]
    $region49: #{tpu_custom_call.1} parent=1 // pred_fallthru
      _
    // Predicated region
    $region50: #{tpu_custom_call.1} parent=1 // pred_check
      _
    $region51: #{tpu_custom_call.1} parent=1 // pred_check_branch
      %764 = sbr.rel (0) target = $region53
    $region52: #{tpu_custom_call.1} parent=1 // pred_region
      %765 = dma.done [#allocation4], 16
    $region53: #{tpu_custom_call.1} parent=1 // pred_fallthru
      _
    %766 = vsyncpa [#allocation4], 1

</llo_original>
